<compile_context>
chip_gen: v5e
topology: v5e:2x2
jax: 0.10.0
libtpu: 0.0.40
codegen_flags: <defaults>
</compile_context>

<pallas_src>
import jax
import jax.numpy as jnp
from jax.experimental import pallas as pl
from jax.experimental.pallas import tpu as pltpu

HIDDEN = 256
LANE = 128  # lane-group width; lin3 out-features padded to a multiple of this


def _round_up(n, m):
    return ((n + m - 1) // m) * m


def _mlp_kernel(x_ref, w1_ref, b1_ref, w2_ref, b2_ref, w3_ref, b3_ref, o_ref):
    # x tile arrives in f32; cast to bf16 on the VPU (which has slack -- the
    # binding resources here are DMA / MXU) instead of a separate XLA pass.
    x = x_ref[...].astype(jnp.bfloat16)

    h1 = jnp.dot(x, w1_ref[...], preferred_element_type=jnp.float32)
    h1 = jnp.maximum(h1 + b1_ref[...], 0.0)             # f32 elementwise (v5e-safe)

    h2 = jnp.dot(h1.astype(jnp.bfloat16), w2_ref[...],
                 preferred_element_type=jnp.float32)
    h2 = jnp.maximum(h2 + b2_ref[...], 0.0)

    y = jnp.dot(h2.astype(jnp.bfloat16), w3_ref[...],
                preferred_element_type=jnp.float32)
    o_ref[...] = (y + b3_ref[...]).astype(o_ref.dtype)   # lane-dense bf16 store


def pack_params(params):
    """One-time packing of (w1,b1,w2,b2,w3,b3) for the kernel.

    Weights stored as (in, out). Returns bf16 weights, f32 biases shaped
    (1, out), with lin3 padded along out-features to a multiple of 128 lanes
    (lane-dense, unmasked stores in the kernel). Do this once, not per call.
    """
    w1, b1, w2, b2, w3, b3 = params
    num_classes = w3.shape[1]
    lanes = _round_up(num_classes, LANE)
    w3_p = jnp.zeros((HIDDEN, lanes), jnp.float32).at[:, :num_classes].set(
        w3.astype(jnp.float32))
    b3_p = jnp.zeros((1, lanes), jnp.float32).at[:, :num_classes].set(
        b3.reshape(1, -1).astype(jnp.float32))
    return (
        w1.astype(jnp.bfloat16),
        b1.reshape(1, -1).astype(jnp.float32),
        w2.astype(jnp.bfloat16),
        b2.reshape(1, -1).astype(jnp.float32),
        w3_p.astype(jnp.bfloat16),
        b3_p,
    )


def _pick_tb(B):
    # Large tiles amortize the ~0.35us per-grid-step overhead (v6e), but keep
    # >= 2 grid steps for big batches so both v7x TensorCores get work.
    if B >= 1024:
        return 512
    if B >= 32:
        return min(256, _round_up((B + 1) // 2, 16))
    if B >= 16:
        return 16
    return B  # tiny batch: one full-extent block, no padding / masking needed


def fully_connected_forward(x, packed_params, num_classes):
    """x: (B, C, H, W) float32 (NCHW, like PyTorch). Returns (B, num_classes) f32."""
    w1_b, b1_f, w2_b, b2_f, w3_b, b3_f = packed_params
    B = x.shape[0]
    input_size = w1_b.shape[0]
    lanes = w3_b.shape[1]

    # Flatten NCHW -> (B, input_size); stays f32 (bf16 cast happens in-kernel).
    x_flat = x.reshape(B, -1)
    assert x_flat.shape[1] == input_size

    TB = _pick_tb(B)
    grid = (pl.cdiv(B, TB),)

    # Resident blocks: constant index_map + single buffer (no double-buffer).
    def resident(shape):
        return pl.BlockSpec(shape, lambda i: (0, 0), pipeline_mode=pl.Buffered(1))

    # VMEM budget: double-buffered x / out tiles, single-buffered weights,
    # plus f32/bf16 intermediates.
    # TODO(synk): for very large input_size (v7x: 64 MiB physical VMEM) add a
    # K-tiled "arbitrary" grid axis over input_size with an f32 accumulator.
    need = (
        2 * TB * input_size * 4                                   # x tile (f32, 2 bufs)
        + 2 * TB * lanes * 2                                      # out tile (bf16, 2 bufs)
        + (input_size * HIDDEN + HIDDEN * HIDDEN + HIDDEN * lanes) * 2  # weights (1 buf)
        + (2 * HIDDEN + lanes) * 4                                # biases
        + 4 * TB * HIDDEN * 4 + TB * lanes * 4                    # h1/h2 (+bf16 copies), y
    )
    vmem_limit = min(max(2 * need, 16 << 20), 56 << 20)

    flops = 2 * B * (input_size * HIDDEN + HIDDEN * HIDDEN + HIDDEN * lanes)
    bytes_accessed = (
        B * input_size * 4
        + (w1_b.size + w2_b.size + w3_b.size) * 2
        + (b1_f.size + b2_f.size + b3_f.size) * 4
        + B * lanes * 2
    )

    out = pl.pallas_call(
        _mlp_kernel,
        out_shape=jax.ShapeDtypeStruct((B, lanes), jnp.bfloat16),
        grid=grid,
        in_specs=[
            pl.BlockSpec((TB, input_size), lambda i: (i, 0)),  # x tile (pipelined)
            resident((input_size, HIDDEN)),                    # w1
            resident((1, HIDDEN)),                             # b1
            resident((HIDDEN, HIDDEN)),                        # w2
            resident((1, HIDDEN)),                             # b2
            resident((HIDDEN, lanes)),                         # w3 (lane-padded)
            resident((1, lanes)),                              # b3 (lane-padded)
        ],
        out_specs=pl.BlockSpec((TB, lanes), lambda i: (i, 0)),
        compiler_params=pltpu.CompilerParams(
            dimension_semantics=("parallel",),
            vmem_limit_bytes=vmem_limit,
        ),
        cost_estimate=pl.CostEstimate(
            flops=flops, transcendentals=0, bytes_accessed=bytes_accessed
        ),
    )(x_flat, w1_b, b1_f, w2_b, b2_f, w3_b, b3_f)

    # Slice off the lane padding and return f32 logits (matches PyTorch).
    return out[:, :num_classes].astype(jnp.float32)


def init_params(key, input_size, num_classes, hidden=HIDDEN):
    """Deterministic synthetic parameters (weights stored as (in, out))."""
    k1, k2, k3, k4, k5, k6 = jax.random.split(key, 6)
    w1 = jax.random.normal(k1, (input_size, hidden), jnp.float32) * 0.02
    b1 = jax.random.normal(k2, (1, hidden), jnp.float32) * 0.01
    w2 = jax.random.normal(k3, (hidden, hidden), jnp.float32) * 0.02
    b2 = jax.random.normal(k4, (1, hidden), jnp.float32) * 0.01
    w3 = jax.random.normal(k5, (hidden, num_classes), jnp.float32) * 0.02
    b3 = jax.random.normal(k6, (1, num_classes), jnp.float32) * 0.01
    return (w1, b1, w2, b2, w3, b3)


def _reference(x, params):
    """Pure-JAX f32 reference for correctness checking."""
    w1, b1, w2, b2, w3, b3 = params
    h = x.reshape(x.shape[0], -1)
    h = jnp.maximum(h @ w1 + b1, 0.0)
    h = jnp.maximum(h @ w2 + b2, 0.0)
    return h @ w3 + b3


if __name__ == "__main__":
    key = jax.random.PRNGKey(0)
    kx, kp = jax.random.split(key)

    B, C, H, W = 2, 4, 16, 16            # input_size = C*H*W = 1024
    num_classes = 10

    x = jax.random.normal(kx, (B, C, H, W), jnp.float32)
    params = init_params(kp, C * H * W, num_classes)

    # One-time weight packing (hoisted out of the forward pass).
    packed = pack_params(params)

    forward = jax.jit(lambda xx: fully_connected_forward(xx, packed, num_classes))
    y = jax.block_until_ready(forward(x))

    y_ref = _reference(x, params)
    assert y.shape == (B, num_classes)
    # bf16 MXU inputs + bf16 logits store (f32 accumulation) -> relaxed tolerance.
    assert jnp.allclose(y, y_ref, atol=2e-2, rtol=2e-2), "mismatch vs reference"

    print("KERNEL_OK")
</pallas_src>

<mosaic_0001>
module attributes {stable_mosaic.version = 11 : i64} {
  func.func @_mlp_kernel(%arg0: i32, %arg1: memref<2x1024xf32, #tpu.memory_space<vmem>>, %arg2: memref<1024x256xbf16, #tpu.memory_space<vmem>>, %arg3: memref<1x256xf32, #tpu.memory_space<vmem>>, %arg4: memref<256x256xbf16, #tpu.memory_space<vmem>>, %arg5: memref<1x256xf32, #tpu.memory_space<vmem>>, %arg6: memref<256x128xbf16, #tpu.memory_space<vmem>>, %arg7: memref<1x128xf32, #tpu.memory_space<vmem>>, %arg8: memref<2x128xbf16, #tpu.memory_space<vmem>>) attributes {dimension_semantics = [#tpu.dimension_semantics<parallel>], iteration_bounds = array<i64: 1>, scalar_prefetch = 0 : i64, scratch_operands = 0 : i64, tpu.core_type = #tpu.core_type<tc>, window_params = [{transform_indices = @transform_0, window_bounds = array<i64: 2, 1024>}, {pipeline_mode = #tpu.pipeline_mode<synchronous>, transform_indices = @transform_1, window_bounds = array<i64: 1024, 256>}, {pipeline_mode = #tpu.pipeline_mode<synchronous>, transform_indices = @transform_2, window_bounds = array<i64: 1, 256>}, {pipeline_mode = #tpu.pipeline_mode<synchronous>, transform_indices = @transform_3, window_bounds = array<i64: 256, 256>}, {pipeline_mode = #tpu.pipeline_mode<synchronous>, transform_indices = @transform_4, window_bounds = array<i64: 1, 256>}, {pipeline_mode = #tpu.pipeline_mode<synchronous>, transform_indices = @transform_5, window_bounds = array<i64: 256, 128>}, {pipeline_mode = #tpu.pipeline_mode<synchronous>, transform_indices = @transform_6, window_bounds = array<i64: 1, 128>}, {transform_indices = @transform_7, window_bounds = array<i64: 2, 128>}]} {
    %c0 = arith.constant 0 : index
    %c0_0 = arith.constant 0 : index
    %0 = vector.load %arg1[%c0, %c0_0] : memref<2x1024xf32, #tpu.memory_space<vmem>>, vector<2x1024xf32>
    %1 = arith.truncf %0 : vector<2x1024xf32> to vector<2x1024xbf16>
    %c0_1 = arith.constant 0 : index
    %c0_2 = arith.constant 0 : index
    %2 = vector.load %arg2[%c0_1, %c0_2] : memref<1024x256xbf16, #tpu.memory_space<vmem>>, vector<1024x256xbf16>
    %cst = arith.constant dense<0.000000e+00> : vector<2x256xf32>
    %3 = tpu.matmul %1, %2, %cst {dimension_numbers = #tpu.dot_dimension_numbers<[1], [0], [0], [1], [0, 0, 1, 1], [], []>} : vector<2x1024xbf16>, vector<1024x256xbf16>, vector<2x256xf32> -> vector<2x256xf32>
    %c0_3 = arith.constant 0 : index
    %c0_4 = arith.constant 0 : index
    %4 = vector.load %arg3[%c0_3, %c0_4] : memref<1x256xf32, #tpu.memory_space<vmem>>, vector<1x256xf32>
    %5 = vector.broadcast %4 : vector<1x256xf32> to vector<2x256xf32>
    %6 = arith.addf %3, %5 : vector<2x256xf32>
    %cst_5 = arith.constant 0.000000e+00 : f32
    %7 = vector.broadcast %cst_5 : f32 to vector<2x256xf32>
    %8 = arith.maximumf %6, %7 : vector<2x256xf32>
    %9 = arith.truncf %8 : vector<2x256xf32> to vector<2x256xbf16>
    %c0_6 = arith.constant 0 : index
    %c0_7 = arith.constant 0 : index
    %10 = vector.load %arg4[%c0_6, %c0_7] : memref<256x256xbf16, #tpu.memory_space<vmem>>, vector<256x256xbf16>
    %cst_8 = arith.constant dense<0.000000e+00> : vector<2x256xf32>
    %11 = tpu.matmul %9, %10, %cst_8 {dimension_numbers = #tpu.dot_dimension_numbers<[1], [0], [0], [1], [0, 0, 1, 1], [], []>} : vector<2x256xbf16>, vector<256x256xbf16>, vector<2x256xf32> -> vector<2x256xf32>
    %c0_9 = arith.constant 0 : index
    %c0_10 = arith.constant 0 : index
    %12 = vector.load %arg5[%c0_9, %c0_10] : memref<1x256xf32, #tpu.memory_space<vmem>>, vector<1x256xf32>
    %13 = vector.broadcast %12 : vector<1x256xf32> to vector<2x256xf32>
    %14 = arith.addf %11, %13 : vector<2x256xf32>
    %cst_11 = arith.constant 0.000000e+00 : f32
    %15 = vector.broadcast %cst_11 : f32 to vector<2x256xf32>
    %16 = arith.maximumf %14, %15 : vector<2x256xf32>
    %17 = arith.truncf %16 : vector<2x256xf32> to vector<2x256xbf16>
    %c0_12 = arith.constant 0 : index
    %c0_13 = arith.constant 0 : index
    %18 = vector.load %arg6[%c0_12, %c0_13] : memref<256x128xbf16, #tpu.memory_space<vmem>>, vector<256x128xbf16>
    %cst_14 = arith.constant dense<0.000000e+00> : vector<2x128xf32>
    %19 = tpu.matmul %17, %18, %cst_14 {dimension_numbers = #tpu.dot_dimension_numbers<[1], [0], [0], [1], [0, 0, 1, 1], [], []>} : vector<2x256xbf16>, vector<256x128xbf16>, vector<2x128xf32> -> vector<2x128xf32>
    %c0_15 = arith.constant 0 : index
    %c0_16 = arith.constant 0 : index
    %20 = vector.load %arg7[%c0_15, %c0_16] : memref<1x128xf32, #tpu.memory_space<vmem>>, vector<1x128xf32>
    %21 = vector.broadcast %20 : vector<1x128xf32> to vector<2x128xf32>
    %22 = arith.addf %19, %21 : vector<2x128xf32>
    %23 = arith.truncf %22 : vector<2x128xf32> to vector<2x128xbf16>
    %c0_17 = arith.constant 0 : index
    %c0_18 = arith.constant 0 : index
    %24 = vector.load %arg8[%c0_17, %c0_18] : memref<2x128xbf16, #tpu.memory_space<vmem>>, vector<2x128xbf16>
    tpu.vector_store %arg8[%c0_17, %c0_18], %23 {strides = array<i32>} : memref<2x128xbf16, #tpu.memory_space<vmem>>, vector<2x128xbf16>,
    return
  }
  func.func @transform_0(%arg0: i32) -> (i32, i32) {
    %c0_i32 = arith.constant 0 : i32
    %c0_i32_0 = arith.constant 0 : i32
    return %arg0, %c0_i32 : i32, i32
  }
  func.func @transform_1(%arg0: i32) -> (i32, i32) {
    %c0_i32 = arith.constant 0 : i32
    %c0_i32_0 = arith.constant 0 : i32
    %c0_i32_1 = arith.constant 0 : i32
    return %c0_i32, %c0_i32_0 : i32, i32
  }
  func.func @transform_2(%arg0: i32) -> (i32, i32) {
    %c0_i32 = arith.constant 0 : i32
    %c0_i32_0 = arith.constant 0 : i32
    %c0_i32_1 = arith.constant 0 : i32
    return %c0_i32, %c0_i32_0 : i32, i32
  }
  func.func @transform_3(%arg0: i32) -> (i32, i32) {
    %c0_i32 = arith.constant 0 : i32
    %c0_i32_0 = arith.constant 0 : i32
    %c0_i32_1 = arith.constant 0 : i32
    return %c0_i32, %c0_i32_0 : i32, i32
  }
  func.func @transform_4(%arg0: i32) -> (i32, i32) {
    %c0_i32 = arith.constant 0 : i32
    %c0_i32_0 = arith.constant 0 : i32
    %c0_i32_1 = arith.constant 0 : i32
    return %c0_i32, %c0_i32_0 : i32, i32
  }
  func.func @transform_5(%arg0: i32) -> (i32, i32) {
    %c0_i32 = arith.constant 0 : i32
    %c0_i32_0 = arith.constant 0 : i32
    %c0_i32_1 = arith.constant 0 : i32
    return %c0_i32, %c0_i32_0 : i32, i32
  }
  func.func @transform_6(%arg0: i32) -> (i32, i32) {
    %c0_i32 = arith.constant 0 : i32
    %c0_i32_0 = arith.constant 0 : i32
    %c0_i32_1 = arith.constant 0 : i32
    return %c0_i32, %c0_i32_0 : i32, i32
  }
  func.func @transform_7(%arg0: i32) -> (i32, i32) {
    %c0_i32 = arith.constant 0 : i32
    %c0_i32_0 = arith.constant 0 : i32
    return %arg0, %c0_i32 : i32, i32
  }
}

</mosaic_0001>

<llo_original>
// kernel: _lambda_.1
$region0: #{_lambda_.1}
  #allocation0 [shape = 'u32[]', space=smem, size = 0x4, offset = 0x4, fixed_abs, tag = 'smem constant byte address 0x4 - core index']
  #allocation1 [shape = 'u32[72,128]{1,0:T(1,128)}', space=vmem, size = 0x9000, scoped, tag = 'internal scratch']
  %s0 = inlined_call_operand.vmem [shape: f32[2,1024], index: 0, kind: input, shape index: {}]
  %s1 = inlined_call_operand.hbm [shape: bf16[1024,256], index: 1, kind: input, shape index: {}]
  %s2 = inlined_call_operand.vmem [shape: f32[1,256], index: 2, kind: input, shape index: {}]
  %s3 = inlined_call_operand.hbm [shape: bf16[256,256], index: 3, kind: input, shape index: {}]
  %s4 = inlined_call_operand.vmem [shape: f32[1,256], index: 4, kind: input, shape index: {}]
  %s5 = inlined_call_operand.vmem [shape: bf16[256,128], index: 5, kind: input, shape index: {}]
  %s6 = inlined_call_operand.vmem [shape: f32[1,128], index: 6, kind: input, shape index: {}]
  %s7 = inlined_call_operand.vmem [shape: bf16[2,128], index: 7, kind: output, shape index: {}]
  %s8 = sld [smem:[#allocation0]]
  $region46: #{_lambda_.1} parent=0
    _
  %s10 = ssub.s32 1, %s8
  %s11 = scalar_select 0, %s10, %s8
  $region1: #{_lambda_.1} parent=0
    #allocation2 [shape = 'u8[524288]{0}', space=vmem, size = 0x80000, scoped, tag = 'input window, operand 1, single buffered']
    #allocation3 [shape = 's32[1]{0}', space=sflag, size = 0x4, scoped, tag = 'scoped memory for _lambda_.1']
    #allocation4 [shape = 'u8[131072]{0}', space=vmem, size = 0x20000, scoped, tag = 'input window, operand 3, single buffered']
    #allocation5 [shape = 's32[1]{0}', space=sflag, size = 0x4, scoped, tag = 'scoped memory for _lambda_.1']
    %12 = vsyncpa [#allocation3], 0
    %13 = vsyncpa [#allocation5], 0
    // Predicated region
    $region2: #{_lambda_.1} parent=1 // pred_check
      _
    $region3: #{_lambda_.1} parent=1 // pred_check_branch
      %15 = sbr.rel (0) target = $region5
    $region4: #{_lambda_.1} parent=1 // pred_region
      _
    $region5: #{_lambda_.1} parent=1 // pred_fallthru
      _
    // Predicated region
    $region6: #{_lambda_.1} parent=1 // pred_check
      _
    $region7: #{_lambda_.1} parent=1 // pred_check_branch
      %17 = sbr.rel (0) target = $region9
    $region8: #{_lambda_.1} parent=1 // pred_region
      %19 = vsyncadd [#allocation3], 0
      %s20 = sshll.u32 %s1, 4
      %s21 = int_to_ptr.hbm [resolvable:$true] %s20
      %s22 = sshll.u32 [#allocation2], 4
      %s23 = int_to_ptr.vmem [resolvable:$true] %s22
      %28 = dma.hbm_to_vmem [thread:$0]  %s21, 16384, %s23, [#allocation3], 128, 128, 8
    $region9: #{_lambda_.1} parent=1 // pred_fallthru
      _
    // Predicated region
    $region10: #{_lambda_.1} parent=1 // pred_check
      _
    $region11: #{_lambda_.1} parent=1 // pred_check_branch
      %30 = sbr.rel (0) target = $region13
    $region12: #{_lambda_.1} parent=1 // pred_region
      _
    $region13: #{_lambda_.1} parent=1 // pred_fallthru
      _
    // Predicated region
    $region14: #{_lambda_.1} parent=1 // pred_check
      _
    $region15: #{_lambda_.1} parent=1 // pred_check_branch
      %32 = sbr.rel (0) target = $region17
    $region16: #{_lambda_.1} parent=1 // pred_region
      %34 = vsyncadd [#allocation5], 0
      %s35 = sshll.u32 %s3, 4
      %s36 = int_to_ptr.hbm [resolvable:$true] %s35
      %s37 = sshll.u32 [#allocation4], 4
      %s38 = int_to_ptr.vmem [resolvable:$true] %s37
      %43 = dma.hbm_to_vmem [thread:$0]  %s36, 4096, %s38, [#allocation5], 128, 128, 8
    $region17: #{_lambda_.1} parent=1 // pred_fallthru
      _
    // Predicated region
    $region18: #{_lambda_.1} parent=1 // pred_check
      _
    $region19: #{_lambda_.1} parent=1 // pred_check_branch
      %45 = sbr.rel (0) target = $region21
    $region20: #{_lambda_.1} parent=1 // pred_region
      _
    $region21: #{_lambda_.1} parent=1 // pred_fallthru
      _
    // Predicated region
    $region22: #{_lambda_.1} parent=1 // pred_check
      _
    $region23: #{_lambda_.1} parent=1 // pred_check_branch
      %47 = sbr.rel (0) target = $region25
    $region24: #{_lambda_.1} parent=1 // pred_region
      _
    $region25: #{_lambda_.1} parent=1 // pred_fallthru
      _
    // Predicated region
    $region26: #{_lambda_.1} parent=1 // pred_check
      _
    $region27: #{_lambda_.1} parent=1 // pred_check_branch
      %49 = sbr.rel (0) target = $region29
    $region28: #{_lambda_.1} parent=1 // pred_region
      _
    $region29: #{_lambda_.1} parent=1 // pred_fallthru
      _
    // Predicated region
    $region30: #{_lambda_.1} parent=1 // pred_check
      _
    $region31: #{_lambda_.1} parent=1 // pred_check_branch
      %51 = sbr.rel (0) target = $region33
    $region32: #{_lambda_.1} parent=1 // pred_region
      %53 = dma.done [#allocation3], 16384
    $region33: #{_lambda_.1} parent=1 // pred_fallthru
      _
    // Predicated region
    $region34: #{_lambda_.1} parent=1 // pred_check
      _
    $region35: #{_lambda_.1} parent=1 // pred_check_branch
      %55 = sbr.rel (0) target = $region37
    $region36: #{_lambda_.1} parent=1 // pred_region
      %57 = dma.done [#allocation5], 4096
    $region37: #{_lambda_.1} parent=1 // pred_fallthru
      _
    %v58 = vld [vmem:[%s0] sm:$0xff]
    %v59 = vld [vmem:[%s0 + $0x8] sm:$0xff]
    %62 = vst [vmem:[#allocation1] ss:$4 sm:$0xff] %v58
    %s63 = scalar_lea.vmem [#allocation1], 32
    %64 = vst [vmem:[%s63] ss:$4 sm:$0xff] %v59
    %v65 = vld.sshfl [vmem:[#allocation1] sm:$0xff pattern:$0x73625140]
    %v66 = vld.sshfl [vmem:[#allocation1 + $0x8] sm:$0xff pattern:$0x73625140]
    %v67 = vld.sshfl [vmem:[#allocation1 + $0x10] sm:$0xff pattern:$0x73625140]
    %v68 = vld.sshfl [vmem:[#allocation1 + $0x18] sm:$0xff pattern:$0x73625140]
    %v69 = vld.sshfl [vmem:[#allocation1 + $0x20] sm:$0xff pattern:$0x73625140]
    %v70 = vld.sshfl [vmem:[#allocation1 + $0x28] sm:$0xff pattern:$0x73625140]
    %v71 = vld.sshfl [vmem:[#allocation1 + $0x30] sm:$0xff pattern:$0x73625140]
    %v72 = vld.sshfl [vmem:[#allocation1 + $0x38] sm:$0xff pattern:$0x73625140]
    %v81 = vpack.c.bf16 %v65, %v65
    %v82 = vpack.c.bf16 %v66, %v66
    %v83 = vpack.c.bf16 %v67, %v67
    %v84 = vpack.c.bf16 %v68, %v68
    %v85 = vpack.c.bf16 %v69, %v69
    %v86 = vpack.c.bf16 %v70, %v70
    %v87 = vpack.c.bf16 %v71, %v71
    %v88 = vpack.c.bf16 %v72, %v72
    %v89 = vld [vmem:[#allocation2] sm:$0xff]
    %v90 = vld [vmem:[#allocation2 + $0x8] sm:$0xff]
    %v91 = vld [vmem:[#allocation2 + $0x10] sm:$0xff]
    %v92 = vld [vmem:[#allocation2 + $0x18] sm:$0xff]
    %v93 = vld [vmem:[#allocation2 + $0x20] sm:$0xff]
    %v94 = vld [vmem:[#allocation2 + $0x28] sm:$0xff]
    %v95 = vld [vmem:[#allocation2 + $0x30] sm:$0xff]
    %v96 = vld [vmem:[#allocation2 + $0x38] sm:$0xff]
    %v97 = vld [vmem:[#allocation2 + $0x40] sm:$0xff]
    %v98 = vld [vmem:[#allocation2 + $0x48] sm:$0xff]
    %v99 = vld [vmem:[#allocation2 + $0x50] sm:$0xff]
    %v100 = vld [vmem:[#allocation2 + $0x58] sm:$0xff]
    %v101 = vld [vmem:[#allocation2 + $0x60] sm:$0xff]
    %v102 = vld [vmem:[#allocation2 + $0x68] sm:$0xff]
    %v103 = vld [vmem:[#allocation2 + $0x70] sm:$0xff]
    %v104 = vld [vmem:[#allocation2 + $0x78] sm:$0xff]
    %v105 = vld [vmem:[#allocation2 + $0x80] sm:$0xff]
    %v106 = vld [vmem:[#allocation2 + $0x88] sm:$0xff]
    %v107 = vld [vmem:[#allocation2 + $0x90] sm:$0xff]
    %v108 = vld [vmem:[#allocation2 + $0x98] sm:$0xff]
    %v109 = vld [vmem:[#allocation2 + $0xa0] sm:$0xff]
    %v110 = vld [vmem:[#allocation2 + $0xa8] sm:$0xff]
    %v111 = vld [vmem:[#allocation2 + $0xb0] sm:$0xff]
    %v112 = vld [vmem:[#allocation2 + $0xb8] sm:$0xff]
    %v113 = vld [vmem:[#allocation2 + $0xc0] sm:$0xff]
    %v114 = vld [vmem:[#allocation2 + $0xc8] sm:$0xff]
    %v115 = vld [vmem:[#allocation2 + $0xd0] sm:$0xff]
    %v116 = vld [vmem:[#allocation2 + $0xd8] sm:$0xff]
    %v117 = vld [vmem:[#allocation2 + $0xe0] sm:$0xff]
    %v118 = vld [vmem:[#allocation2 + $0xe8] sm:$0xff]
    %v119 = vld [vmem:[#allocation2 + $0xf0] sm:$0xff]
    %v120 = vld [vmem:[#allocation2 + $0xf8] sm:$0xff]
    %v121 = vld [vmem:[#allocation2 + $0x100] sm:$0xff]
    %v122 = vld [vmem:[#allocation2 + $0x108] sm:$0xff]
    %v123 = vld [vmem:[#allocation2 + $0x110] sm:$0xff]
    %v124 = vld [vmem:[#allocation2 + $0x118] sm:$0xff]
    %v125 = vld [vmem:[#allocation2 + $0x120] sm:$0xff]
    %v126 = vld [vmem:[#allocation2 + $0x128] sm:$0xff]
    %v127 = vld [vmem:[#allocation2 + $0x130] sm:$0xff]
    %v128 = vld [vmem:[#allocation2 + $0x138] sm:$0xff]
    %v129 = vld [vmem:[#allocation2 + $0x140] sm:$0xff]
    %v130 = vld [vmem:[#allocation2 + $0x148] sm:$0xff]
    %v131 = vld [vmem:[#allocation2 + $0x150] sm:$0xff]
    %v132 = vld [vmem:[#allocation2 + $0x158] sm:$0xff]
    %v133 = vld [vmem:[#allocation2 + $0x160] sm:$0xff]
    %v134 = vld [vmem:[#allocation2 + $0x168] sm:$0xff]
    %v135 = vld [vmem:[#allocation2 + $0x170] sm:$0xff]
    %v136 = vld [vmem:[#allocation2 + $0x178] sm:$0xff]
    %v137 = vld [vmem:[#allocation2 + $0x180] sm:$0xff]
    %v138 = vld [vmem:[#allocation2 + $0x188] sm:$0xff]
    %v139 = vld [vmem:[#allocation2 + $0x190] sm:$0xff]
    %v140 = vld [vmem:[#allocation2 + $0x198] sm:$0xff]
    %v141 = vld [vmem:[#allocation2 + $0x1a0] sm:$0xff]
    %v142 = vld [vmem:[#allocation2 + $0x1a8] sm:$0xff]
    %v143 = vld [vmem:[#allocation2 + $0x1b0] sm:$0xff]
    %v144 = vld [vmem:[#allocation2 + $0x1b8] sm:$0xff]
    %v145 = vld [vmem:[#allocation2 + $0x1c0] sm:$0xff]
    %v146 = vld [vmem:[#allocation2 + $0x1c8] sm:$0xff]
    %v147 = vld [vmem:[#allocation2 + $0x1d0] sm:$0xff]
    %v148 = vld [vmem:[#allocation2 + $0x1d8] sm:$0xff]
    %v149 = vld [vmem:[#allocation2 + $0x1e0] sm:$0xff]
    %v150 = vld [vmem:[#allocation2 + $0x1e8] sm:$0xff]
    %v151 = vld [vmem:[#allocation2 + $0x1f0] sm:$0xff]
    %v152 = vld [vmem:[#allocation2 + $0x1f8] sm:$0xff]
    %v153 = vld [vmem:[#allocation2 + $0x200] sm:$0xff]
    %v154 = vld [vmem:[#allocation2 + $0x208] sm:$0xff]
    %v155 = vld [vmem:[#allocation2 + $0x210] sm:$0xff]
    %v156 = vld [vmem:[#allocation2 + $0x218] sm:$0xff]
    %v157 = vld [vmem:[#allocation2 + $0x220] sm:$0xff]
    %v158 = vld [vmem:[#allocation2 + $0x228] sm:$0xff]
    %v159 = vld [vmem:[#allocation2 + $0x230] sm:$0xff]
    %v160 = vld [vmem:[#allocation2 + $0x238] sm:$0xff]
    %v161 = vld [vmem:[#allocation2 + $0x240] sm:$0xff]
    %v162 = vld [vmem:[#allocation2 + $0x248] sm:$0xff]
    %v163 = vld [vmem:[#allocation2 + $0x250] sm:$0xff]
    %v164 = vld [vmem:[#allocation2 + $0x258] sm:$0xff]
    %v165 = vld [vmem:[#allocation2 + $0x260] sm:$0xff]
    %v166 = vld [vmem:[#allocation2 + $0x268] sm:$0xff]
    %v167 = vld [vmem:[#allocation2 + $0x270] sm:$0xff]
    %v168 = vld [vmem:[#allocation2 + $0x278] sm:$0xff]
    %v169 = vld [vmem:[#allocation2 + $0x280] sm:$0xff]
    %v170 = vld [vmem:[#allocation2 + $0x288] sm:$0xff]
    %v171 = vld [vmem:[#allocation2 + $0x290] sm:$0xff]
    %v172 = vld [vmem:[#allocation2 + $0x298] sm:$0xff]
    %v173 = vld [vmem:[#allocation2 + $0x2a0] sm:$0xff]
    %v174 = vld [vmem:[#allocation2 + $0x2a8] sm:$0xff]
    %v175 = vld [vmem:[#allocation2 + $0x2b0] sm:$0xff]
    %v176 = vld [vmem:[#allocation2 + $0x2b8] sm:$0xff]
    %v177 = vld [vmem:[#allocation2 + $0x2c0] sm:$0xff]
    %v178 = vld [vmem:[#allocation2 + $0x2c8] sm:$0xff]
    %v179 = vld [vmem:[#allocation2 + $0x2d0] sm:$0xff]
    %v180 = vld [vmem:[#allocation2 + $0x2d8] sm:$0xff]
    %v181 = vld [vmem:[#allocation2 + $0x2e0] sm:$0xff]
    %v182 = vld [vmem:[#allocation2 + $0x2e8] sm:$0xff]
    %v183 = vld [vmem:[#allocation2 + $0x2f0] sm:$0xff]
    %v184 = vld [vmem:[#allocation2 + $0x2f8] sm:$0xff]
    %v185 = vld [vmem:[#allocation2 + $0x300] sm:$0xff]
    %v186 = vld [vmem:[#allocation2 + $0x308] sm:$0xff]
    %v187 = vld [vmem:[#allocation2 + $0x310] sm:$0xff]
    %v188 = vld [vmem:[#allocation2 + $0x318] sm:$0xff]
    %v189 = vld [vmem:[#allocation2 + $0x320] sm:$0xff]
    %v190 = vld [vmem:[#allocation2 + $0x328] sm:$0xff]
    %v191 = vld [vmem:[#allocation2 + $0x330] sm:$0xff]
    %v192 = vld [vmem:[#allocation2 + $0x338] sm:$0xff]
    %v193 = vld [vmem:[#allocation2 + $0x340] sm:$0xff]
    %v194 = vld [vmem:[#allocation2 + $0x348] sm:$0xff]
    %v195 = vld [vmem:[#allocation2 + $0x350] sm:$0xff]
    %v196 = vld [vmem:[#allocation2 + $0x358] sm:$0xff]
    %v197 = vld [vmem:[#allocation2 + $0x360] sm:$0xff]
    %v198 = vld [vmem:[#allocation2 + $0x368] sm:$0xff]
    %v199 = vld [vmem:[#allocation2 + $0x370] sm:$0xff]
    %v200 = vld [vmem:[#allocation2 + $0x378] sm:$0xff]
    %v201 = vld [vmem:[#allocation2 + $0x380] sm:$0xff]
    %v202 = vld [vmem:[#allocation2 + $0x388] sm:$0xff]
    %v203 = vld [vmem:[#allocation2 + $0x390] sm:$0xff]
    %v204 = vld [vmem:[#allocation2 + $0x398] sm:$0xff]
    %v205 = vld [vmem:[#allocation2 + $0x3a0] sm:$0xff]
    %v206 = vld [vmem:[#allocation2 + $0x3a8] sm:$0xff]
    %v207 = vld [vmem:[#allocation2 + $0x3b0] sm:$0xff]
    %v208 = vld [vmem:[#allocation2 + $0x3b8] sm:$0xff]
    %v209 = vld [vmem:[#allocation2 + $0x3c0] sm:$0xff]
    %v210 = vld [vmem:[#allocation2 + $0x3c8] sm:$0xff]
    %v211 = vld [vmem:[#allocation2 + $0x3d0] sm:$0xff]
    %v212 = vld [vmem:[#allocation2 + $0x3d8] sm:$0xff]
    %v213 = vld [vmem:[#allocation2 + $0x3e0] sm:$0xff]
    %v214 = vld [vmem:[#allocation2 + $0x3e8] sm:$0xff]
    %v215 = vld [vmem:[#allocation2 + $0x3f0] sm:$0xff]
    %v216 = vld [vmem:[#allocation2 + $0x3f8] sm:$0xff]
    %v217 = vld [vmem:[%s2] sm:$0x3]
    %v219 = vperm.slane %v217, 0
    %v220 = vperm.slane %v217, 1
    %v351 = vunpack.c.l.b16 %v89
    %v352 = vunpack.c.h.b16 %v89
    %v353 = vunpack.c.l.b16 %v90
    %v354 = vunpack.c.h.b16 %v90
    %v355 = vunpack.c.l.b16 %v91
    %v356 = vunpack.c.h.b16 %v91
    %v357 = vunpack.c.l.b16 %v92
    %v358 = vunpack.c.h.b16 %v92
    %v359 = vunpack.c.l.b16 %v93
    %v360 = vunpack.c.h.b16 %v93
    %v361 = vunpack.c.l.b16 %v94
    %v362 = vunpack.c.h.b16 %v94
    %v363 = vunpack.c.l.b16 %v95
    %v364 = vunpack.c.h.b16 %v95
    %v365 = vunpack.c.l.b16 %v96
    %v366 = vunpack.c.h.b16 %v96
    %v367 = vunpack.c.l.b16 %v97
    %v368 = vunpack.c.h.b16 %v97
    %v369 = vunpack.c.l.b16 %v98
    %v370 = vunpack.c.h.b16 %v98
    %v371 = vunpack.c.l.b16 %v99
    %v372 = vunpack.c.h.b16 %v99
    %v373 = vunpack.c.l.b16 %v100
    %v374 = vunpack.c.h.b16 %v100
    %v375 = vunpack.c.l.b16 %v101
    %v376 = vunpack.c.h.b16 %v101
    %v377 = vunpack.c.l.b16 %v102
    %v378 = vunpack.c.h.b16 %v102
    %v379 = vunpack.c.l.b16 %v103
    %v380 = vunpack.c.h.b16 %v103
    %v381 = vunpack.c.l.b16 %v104
    %v382 = vunpack.c.h.b16 %v104
    %v383 = vunpack.c.l.b16 %v105
    %v384 = vunpack.c.h.b16 %v105
    %v385 = vunpack.c.l.b16 %v106
    %v386 = vunpack.c.h.b16 %v106
    %v387 = vunpack.c.l.b16 %v107
    %v388 = vunpack.c.h.b16 %v107
    %v389 = vunpack.c.l.b16 %v108
    %v390 = vunpack.c.h.b16 %v108
    %v391 = vunpack.c.l.b16 %v109
    %v392 = vunpack.c.h.b16 %v109
    %v393 = vunpack.c.l.b16 %v110
    %v394 = vunpack.c.h.b16 %v110
    %v395 = vunpack.c.l.b16 %v111
    %v396 = vunpack.c.h.b16 %v111
    %v397 = vunpack.c.l.b16 %v112
    %v398 = vunpack.c.h.b16 %v112
    %v399 = vunpack.c.l.b16 %v113
    %v400 = vunpack.c.h.b16 %v113
    %v401 = vunpack.c.l.b16 %v114
    %v402 = vunpack.c.h.b16 %v114
    %v403 = vunpack.c.l.b16 %v115
    %v404 = vunpack.c.h.b16 %v115
    %v405 = vunpack.c.l.b16 %v116
    %v406 = vunpack.c.h.b16 %v116
    %v407 = vunpack.c.l.b16 %v117
    %v408 = vunpack.c.h.b16 %v117
    %v409 = vunpack.c.l.b16 %v118
    %v410 = vunpack.c.h.b16 %v118
    %v411 = vunpack.c.l.b16 %v119
    %v412 = vunpack.c.h.b16 %v119
    %v413 = vunpack.c.l.b16 %v120
    %v414 = vunpack.c.h.b16 %v120
    %v415 = vunpack.c.l.b16 %v121
    %v416 = vunpack.c.h.b16 %v121
    %v417 = vunpack.c.l.b16 %v122
    %v418 = vunpack.c.h.b16 %v122
    %v419 = vunpack.c.l.b16 %v123
    %v420 = vunpack.c.h.b16 %v123
    %v421 = vunpack.c.l.b16 %v124
    %v422 = vunpack.c.h.b16 %v124
    %v423 = vunpack.c.l.b16 %v125
    %v424 = vunpack.c.h.b16 %v125
    %v425 = vunpack.c.l.b16 %v126
    %v426 = vunpack.c.h.b16 %v126
    %v427 = vunpack.c.l.b16 %v127
    %v428 = vunpack.c.h.b16 %v127
    %v429 = vunpack.c.l.b16 %v128
    %v430 = vunpack.c.h.b16 %v128
    %v431 = vunpack.c.l.b16 %v129
    %v432 = vunpack.c.h.b16 %v129
    %v433 = vunpack.c.l.b16 %v130
    %v434 = vunpack.c.h.b16 %v130
    %v435 = vunpack.c.l.b16 %v131
    %v436 = vunpack.c.h.b16 %v131
    %v437 = vunpack.c.l.b16 %v132
    %v438 = vunpack.c.h.b16 %v132
    %v439 = vunpack.c.l.b16 %v133
    %v440 = vunpack.c.h.b16 %v133
    %v441 = vunpack.c.l.b16 %v134
    %v442 = vunpack.c.h.b16 %v134
    %v443 = vunpack.c.l.b16 %v135
    %v444 = vunpack.c.h.b16 %v135
    %v445 = vunpack.c.l.b16 %v136
    %v446 = vunpack.c.h.b16 %v136
    %v447 = vunpack.c.l.b16 %v137
    %v448 = vunpack.c.h.b16 %v137
    %v449 = vunpack.c.l.b16 %v138
    %v450 = vunpack.c.h.b16 %v138
    %v451 = vunpack.c.l.b16 %v139
    %v452 = vunpack.c.h.b16 %v139
    %v453 = vunpack.c.l.b16 %v140
    %v454 = vunpack.c.h.b16 %v140
    %v455 = vunpack.c.l.b16 %v141
    %v456 = vunpack.c.h.b16 %v141
    %v457 = vunpack.c.l.b16 %v142
    %v458 = vunpack.c.h.b16 %v142
    %v459 = vunpack.c.l.b16 %v143
    %v460 = vunpack.c.h.b16 %v143
    %v461 = vunpack.c.l.b16 %v144
    %v462 = vunpack.c.h.b16 %v144
    %v463 = vunpack.c.l.b16 %v145
    %v464 = vunpack.c.h.b16 %v145
    %v465 = vunpack.c.l.b16 %v146
    %v466 = vunpack.c.h.b16 %v146
    %v467 = vunpack.c.l.b16 %v147
    %v468 = vunpack.c.h.b16 %v147
    %v469 = vunpack.c.l.b16 %v148
    %v470 = vunpack.c.h.b16 %v148
    %v471 = vunpack.c.l.b16 %v149
    %v472 = vunpack.c.h.b16 %v149
    %v473 = vunpack.c.l.b16 %v150
    %v474 = vunpack.c.h.b16 %v150
    %v475 = vunpack.c.l.b16 %v151
    %v476 = vunpack.c.h.b16 %v151
    %v477 = vunpack.c.l.b16 %v152
    %v478 = vunpack.c.h.b16 %v152
    %v479 = vunpack.c.l.b16 %v153
    %v480 = vunpack.c.h.b16 %v153
    %v481 = vunpack.c.l.b16 %v154
    %v482 = vunpack.c.h.b16 %v154
    %v483 = vunpack.c.l.b16 %v155
    %v484 = vunpack.c.h.b16 %v155
    %v485 = vunpack.c.l.b16 %v156
    %v486 = vunpack.c.h.b16 %v156
    %v487 = vunpack.c.l.b16 %v157
    %v488 = vunpack.c.h.b16 %v157
    %v489 = vunpack.c.l.b16 %v158
    %v490 = vunpack.c.h.b16 %v158
    %v491 = vunpack.c.l.b16 %v159
    %v492 = vunpack.c.h.b16 %v159
    %v493 = vunpack.c.l.b16 %v160
    %v494 = vunpack.c.h.b16 %v160
    %v495 = vunpack.c.l.b16 %v161
    %v496 = vunpack.c.h.b16 %v161
    %v497 = vunpack.c.l.b16 %v162
    %v498 = vunpack.c.h.b16 %v162
    %v499 = vunpack.c.l.b16 %v163
    %v500 = vunpack.c.h.b16 %v163
    %v501 = vunpack.c.l.b16 %v164
    %v502 = vunpack.c.h.b16 %v164
    %v503 = vunpack.c.l.b16 %v165
    %v504 = vunpack.c.h.b16 %v165
    %v505 = vunpack.c.l.b16 %v166
    %v506 = vunpack.c.h.b16 %v166
    %v507 = vunpack.c.l.b16 %v167
    %v508 = vunpack.c.h.b16 %v167
    %v509 = vunpack.c.l.b16 %v168
    %v510 = vunpack.c.h.b16 %v168
    %v511 = vunpack.c.l.b16 %v169
    %v512 = vunpack.c.h.b16 %v169
    %v513 = vunpack.c.l.b16 %v170
    %v514 = vunpack.c.h.b16 %v170
    %v515 = vunpack.c.l.b16 %v171
    %v516 = vunpack.c.h.b16 %v171
    %v517 = vunpack.c.l.b16 %v172
    %v518 = vunpack.c.h.b16 %v172
    %v519 = vunpack.c.l.b16 %v173
    %v520 = vunpack.c.h.b16 %v173
    %v521 = vunpack.c.l.b16 %v174
    %v522 = vunpack.c.h.b16 %v174
    %v523 = vunpack.c.l.b16 %v175
    %v524 = vunpack.c.h.b16 %v175
    %v525 = vunpack.c.l.b16 %v176
    %v526 = vunpack.c.h.b16 %v176
    %v527 = vunpack.c.l.b16 %v177
    %v528 = vunpack.c.h.b16 %v177
    %v529 = vunpack.c.l.b16 %v178
    %v530 = vunpack.c.h.b16 %v178
    %v531 = vunpack.c.l.b16 %v179
    %v532 = vunpack.c.h.b16 %v179
    %v533 = vunpack.c.l.b16 %v180
    %v534 = vunpack.c.h.b16 %v180
    %v535 = vunpack.c.l.b16 %v181
    %v536 = vunpack.c.h.b16 %v181
    %v537 = vunpack.c.l.b16 %v182
    %v538 = vunpack.c.h.b16 %v182
    %v539 = vunpack.c.l.b16 %v183
    %v540 = vunpack.c.h.b16 %v183
    %v541 = vunpack.c.l.b16 %v184
    %v542 = vunpack.c.h.b16 %v184
    %v543 = vunpack.c.l.b16 %v185
    %v544 = vunpack.c.h.b16 %v185
    %v545 = vunpack.c.l.b16 %v186
    %v546 = vunpack.c.h.b16 %v186
    %v547 = vunpack.c.l.b16 %v187
    %v548 = vunpack.c.h.b16 %v187
    %v549 = vunpack.c.l.b16 %v188
    %v550 = vunpack.c.h.b16 %v188
    %v551 = vunpack.c.l.b16 %v189
    %v552 = vunpack.c.h.b16 %v189
    %v553 = vunpack.c.l.b16 %v190
    %v554 = vunpack.c.h.b16 %v190
    %v555 = vunpack.c.l.b16 %v191
    %v556 = vunpack.c.h.b16 %v191
    %v557 = vunpack.c.l.b16 %v192
    %v558 = vunpack.c.h.b16 %v192
    %v559 = vunpack.c.l.b16 %v193
    %v560 = vunpack.c.h.b16 %v193
    %v561 = vunpack.c.l.b16 %v194
    %v562 = vunpack.c.h.b16 %v194
    %v563 = vunpack.c.l.b16 %v195
    %v564 = vunpack.c.h.b16 %v195
    %v565 = vunpack.c.l.b16 %v196
    %v566 = vunpack.c.h.b16 %v196
    %v567 = vunpack.c.l.b16 %v197
    %v568 = vunpack.c.h.b16 %v197
    %v569 = vunpack.c.l.b16 %v198
    %v570 = vunpack.c.h.b16 %v198
    %v571 = vunpack.c.l.b16 %v199
    %v572 = vunpack.c.h.b16 %v199
    %v573 = vunpack.c.l.b16 %v200
    %v574 = vunpack.c.h.b16 %v200
    %v575 = vunpack.c.l.b16 %v201
    %v576 = vunpack.c.h.b16 %v201
    %v577 = vunpack.c.l.b16 %v202
    %v578 = vunpack.c.h.b16 %v202
    %v579 = vunpack.c.l.b16 %v203
    %v580 = vunpack.c.h.b16 %v203
    %v581 = vunpack.c.l.b16 %v204
    %v582 = vunpack.c.h.b16 %v204
    %v583 = vunpack.c.l.b16 %v205
    %v584 = vunpack.c.h.b16 %v205
    %v585 = vunpack.c.l.b16 %v206
    %v586 = vunpack.c.h.b16 %v206
    %v587 = vunpack.c.l.b16 %v207
    %v588 = vunpack.c.h.b16 %v207
    %v589 = vunpack.c.l.b16 %v208
    %v590 = vunpack.c.h.b16 %v208
    %v591 = vunpack.c.l.b16 %v209
    %v592 = vunpack.c.h.b16 %v209
    %v593 = vunpack.c.l.b16 %v210
    %v594 = vunpack.c.h.b16 %v210
    %v595 = vunpack.c.l.b16 %v211
    %v596 = vunpack.c.h.b16 %v211
    %v597 = vunpack.c.l.b16 %v212
    %v598 = vunpack.c.h.b16 %v212
    %v599 = vunpack.c.l.b16 %v213
    %v600 = vunpack.c.h.b16 %v213
    %v601 = vunpack.c.l.b16 %v214
    %v602 = vunpack.c.h.b16 %v214
    %v603 = vunpack.c.l.b16 %v215
    %v604 = vunpack.c.h.b16 %v215
    %v605 = vunpack.c.l.b16 %v216
    %v606 = vunpack.c.h.b16 %v216
    %v607 = vpack.c.b16 %v353, %v351
    %v608 = vpack.c.b16 %v354, %v352
    %v609 = vpack.c.b16 %v357, %v355
    %v610 = vpack.c.b16 %v358, %v356
    %v611 = vpack.c.b16 %v361, %v359
    %v612 = vpack.c.b16 %v362, %v360
    %v613 = vpack.c.b16 %v365, %v363
    %v614 = vpack.c.b16 %v366, %v364
    %v615 = vpack.c.b16 %v369, %v367
    %v616 = vpack.c.b16 %v370, %v368
    %v617 = vpack.c.b16 %v373, %v371
    %v618 = vpack.c.b16 %v374, %v372
    %v619 = vpack.c.b16 %v377, %v375
    %v620 = vpack.c.b16 %v378, %v376
    %v621 = vpack.c.b16 %v381, %v379
    %v622 = vpack.c.b16 %v382, %v380
    %v623 = vpack.c.b16 %v385, %v383
    %v624 = vpack.c.b16 %v386, %v384
    %v625 = vpack.c.b16 %v389, %v387
    %v626 = vpack.c.b16 %v390, %v388
    %v627 = vpack.c.b16 %v393, %v391
    %v628 = vpack.c.b16 %v394, %v392
    %v629 = vpack.c.b16 %v397, %v395
    %v630 = vpack.c.b16 %v398, %v396
    %v631 = vpack.c.b16 %v401, %v399
    %v632 = vpack.c.b16 %v402, %v400
    %v633 = vpack.c.b16 %v405, %v403
    %v634 = vpack.c.b16 %v406, %v404
    %v635 = vpack.c.b16 %v409, %v407
    %v636 = vpack.c.b16 %v410, %v408
    %v637 = vpack.c.b16 %v413, %v411
    %v638 = vpack.c.b16 %v414, %v412
    %v639 = vpack.c.b16 %v417, %v415
    %v640 = vpack.c.b16 %v418, %v416
    %v641 = vpack.c.b16 %v421, %v419
    %v642 = vpack.c.b16 %v422, %v420
    %v643 = vpack.c.b16 %v425, %v423
    %v644 = vpack.c.b16 %v426, %v424
    %v645 = vpack.c.b16 %v429, %v427
    %v646 = vpack.c.b16 %v430, %v428
    %v647 = vpack.c.b16 %v433, %v431
    %v648 = vpack.c.b16 %v434, %v432
    %v649 = vpack.c.b16 %v437, %v435
    %v650 = vpack.c.b16 %v438, %v436
    %v651 = vpack.c.b16 %v441, %v439
    %v652 = vpack.c.b16 %v442, %v440
    %v653 = vpack.c.b16 %v445, %v443
    %v654 = vpack.c.b16 %v446, %v444
    %v655 = vpack.c.b16 %v449, %v447
    %v656 = vpack.c.b16 %v450, %v448
    %v657 = vpack.c.b16 %v453, %v451
    %v658 = vpack.c.b16 %v454, %v452
    %v659 = vpack.c.b16 %v457, %v455
    %v660 = vpack.c.b16 %v458, %v456
    %v661 = vpack.c.b16 %v461, %v459
    %v662 = vpack.c.b16 %v462, %v460
    %v663 = vpack.c.b16 %v465, %v463
    %v664 = vpack.c.b16 %v466, %v464
    %v665 = vpack.c.b16 %v469, %v467
    %v666 = vpack.c.b16 %v470, %v468
    %v667 = vpack.c.b16 %v473, %v471
    %v668 = vpack.c.b16 %v474, %v472
    %v669 = vpack.c.b16 %v477, %v475
    %v670 = vpack.c.b16 %v478, %v476
    %v671 = vpack.c.b16 %v481, %v479
    %v672 = vpack.c.b16 %v482, %v480
    %v673 = vpack.c.b16 %v485, %v483
    %v674 = vpack.c.b16 %v486, %v484
    %v675 = vpack.c.b16 %v489, %v487
    %v676 = vpack.c.b16 %v490, %v488
    %v677 = vpack.c.b16 %v493, %v491
    %v678 = vpack.c.b16 %v494, %v492
    %v679 = vpack.c.b16 %v497, %v495
    %v680 = vpack.c.b16 %v498, %v496
    %v681 = vpack.c.b16 %v501, %v499
    %v682 = vpack.c.b16 %v502, %v500
    %v683 = vpack.c.b16 %v505, %v503
    %v684 = vpack.c.b16 %v506, %v504
    %v685 = vpack.c.b16 %v509, %v507
    %v686 = vpack.c.b16 %v510, %v508
    %v687 = vpack.c.b16 %v513, %v511
    %v688 = vpack.c.b16 %v514, %v512
    %v689 = vpack.c.b16 %v517, %v515
    %v690 = vpack.c.b16 %v518, %v516
    %v691 = vpack.c.b16 %v521, %v519
    %v692 = vpack.c.b16 %v522, %v520
    %v693 = vpack.c.b16 %v525, %v523
    %v694 = vpack.c.b16 %v526, %v524
    %v695 = vpack.c.b16 %v529, %v527
    %v696 = vpack.c.b16 %v530, %v528
    %v697 = vpack.c.b16 %v533, %v531
    %v698 = vpack.c.b16 %v534, %v532
    %v699 = vpack.c.b16 %v537, %v535
    %v700 = vpack.c.b16 %v538, %v536
    %v701 = vpack.c.b16 %v541, %v539
    %v702 = vpack.c.b16 %v542, %v540
    %v703 = vpack.c.b16 %v545, %v543
    %v704 = vpack.c.b16 %v546, %v544
    %v705 = vpack.c.b16 %v549, %v547
    %v706 = vpack.c.b16 %v550, %v548
    %v707 = vpack.c.b16 %v553, %v551
    %v708 = vpack.c.b16 %v554, %v552
    %v709 = vpack.c.b16 %v557, %v555
    %v710 = vpack.c.b16 %v558, %v556
    %v711 = vpack.c.b16 %v561, %v559
    %v712 = vpack.c.b16 %v562, %v560
    %v713 = vpack.c.b16 %v565, %v563
    %v714 = vpack.c.b16 %v566, %v564
    %v715 = vpack.c.b16 %v569, %v567
    %v716 = vpack.c.b16 %v570, %v568
    %v717 = vpack.c.b16 %v573, %v571
    %v718 = vpack.c.b16 %v574, %v572
    %v719 = vpack.c.b16 %v577, %v575
    %v720 = vpack.c.b16 %v578, %v576
    %v721 = vpack.c.b16 %v581, %v579
    %v722 = vpack.c.b16 %v582, %v580
    %v723 = vpack.c.b16 %v585, %v583
    %v724 = vpack.c.b16 %v586, %v584
    %v725 = vpack.c.b16 %v589, %v587
    %v726 = vpack.c.b16 %v590, %v588
    %v727 = vpack.c.b16 %v593, %v591
    %v728 = vpack.c.b16 %v594, %v592
    %v729 = vpack.c.b16 %v597, %v595
    %v730 = vpack.c.b16 %v598, %v596
    %v731 = vpack.c.b16 %v601, %v599
    %v732 = vpack.c.b16 %v602, %v600
    %v733 = vpack.c.b16 %v605, %v603
    %v734 = vpack.c.b16 %v606, %v604
    %863 = vmatpush.bf16.msra.mxu0 %v621
    %864 = vmatpush.bf16.msra.mxu0 %v619
    %865 = vmatpush.bf16.msra.mxu0 %v617
    %866 = vmatpush.bf16.msra.mxu0 %v615
    %867 = vmatpush.bf16.msra.mxu0 %v613
    %868 = vmatpush.bf16.msra.mxu0 %v611
    %869 = vmatpush.bf16.msra.mxu0 %v609
    %870 = vmatpush.bf16.msra.mxu0 %v607
    %871 = vmatmul.bf16.gmra.mxu0 %v81
    %v872 = vpop.f32.mrf.mxu0
    %v873 = vadd.f32 %v219, %v872
    %v874 = vpop.f32.mrf.mxu0
    %875 = vdwg.mxu0
    %876 = vmatpush.bf16.msra.mxu0 %v637
    %877 = vmatpush.bf16.msra.mxu0 %v635
    %878 = vmatpush.bf16.msra.mxu0 %v633
    %879 = vmatpush.bf16.msra.mxu0 %v631
    %880 = vmatpush.bf16.msra.mxu0 %v629
    %881 = vmatpush.bf16.msra.mxu0 %v627
    %882 = vmatpush.bf16.msra.mxu0 %v625
    %883 = vmatpush.bf16.msra.mxu0 %v623
    %884 = vmatmul.bf16.gmra.mxu0 %v82
    %v885 = vpop.f32.mrf.mxu0
    %v886 = vadd.f32 %v873, %v885
    %v887 = vpop.f32.mrf.mxu0
    %888 = vdwg.mxu0
    %889 = vmatpush.bf16.msra.mxu0 %v653
    %890 = vmatpush.bf16.msra.mxu0 %v651
    %891 = vmatpush.bf16.msra.mxu0 %v649
    %892 = vmatpush.bf16.msra.mxu0 %v647
    %893 = vmatpush.bf16.msra.mxu0 %v645
    %894 = vmatpush.bf16.msra.mxu0 %v643
    %895 = vmatpush.bf16.msra.mxu0 %v641
    %896 = vmatpush.bf16.msra.mxu0 %v639
    %897 = vmatmul.bf16.gmra.mxu0 %v83
    %v898 = vpop.f32.mrf.mxu0
    %v899 = vadd.f32 %v886, %v898
    %v900 = vpop.f32.mrf.mxu0
    %901 = vdwg.mxu0
    %902 = vmatpush.bf16.msra.mxu0 %v669
    %903 = vmatpush.bf16.msra.mxu0 %v667
    %904 = vmatpush.bf16.msra.mxu0 %v665
    %905 = vmatpush.bf16.msra.mxu0 %v663
    %906 = vmatpush.bf16.msra.mxu0 %v661
    %907 = vmatpush.bf16.msra.mxu0 %v659
    %908 = vmatpush.bf16.msra.mxu0 %v657
    %909 = vmatpush.bf16.msra.mxu0 %v655
    %910 = vmatmul.bf16.gmra.mxu0 %v84
    %v911 = vpop.f32.mrf.mxu0
    %v912 = vadd.f32 %v899, %v911
    %v913 = vpop.f32.mrf.mxu0
    %914 = vdwg.mxu0
    %915 = vmatpush.bf16.msra.mxu0 %v685
    %916 = vmatpush.bf16.msra.mxu0 %v683
    %917 = vmatpush.bf16.msra.mxu0 %v681
    %918 = vmatpush.bf16.msra.mxu0 %v679
    %919 = vmatpush.bf16.msra.mxu0 %v677
    %920 = vmatpush.bf16.msra.mxu0 %v675
    %921 = vmatpush.bf16.msra.mxu0 %v673
    %922 = vmatpush.bf16.msra.mxu0 %v671
    %923 = vmatmul.bf16.gmra.mxu0 %v85
    %v924 = vpop.f32.mrf.mxu0
    %v925 = vadd.f32 %v912, %v924
    %v926 = vpop.f32.mrf.mxu0
    %927 = vdwg.mxu0
    %928 = vmatpush.bf16.msra.mxu0 %v701
    %929 = vmatpush.bf16.msra.mxu0 %v699
    %930 = vmatpush.bf16.msra.mxu0 %v697
    %931 = vmatpush.bf16.msra.mxu0 %v695
    %932 = vmatpush.bf16.msra.mxu0 %v693
    %933 = vmatpush.bf16.msra.mxu0 %v691
    %934 = vmatpush.bf16.msra.mxu0 %v689
    %935 = vmatpush.bf16.msra.mxu0 %v687
    %936 = vmatmul.bf16.gmra.mxu0 %v86
    %v937 = vpop.f32.mrf.mxu0
    %v938 = vadd.f32 %v925, %v937
    %v939 = vpop.f32.mrf.mxu0
    %940 = vdwg.mxu0
    %941 = vmatpush.bf16.msra.mxu0 %v717
    %942 = vmatpush.bf16.msra.mxu0 %v715
    %943 = vmatpush.bf16.msra.mxu0 %v713
    %944 = vmatpush.bf16.msra.mxu0 %v711
    %945 = vmatpush.bf16.msra.mxu0 %v709
    %946 = vmatpush.bf16.msra.mxu0 %v707
    %947 = vmatpush.bf16.msra.mxu0 %v705
    %948 = vmatpush.bf16.msra.mxu0 %v703
    %949 = vmatmul.bf16.gmra.mxu0 %v87
    %v950 = vpop.f32.mrf.mxu0
    %v951 = vadd.f32 %v938, %v950
    %v952 = vpop.f32.mrf.mxu0
    %953 = vdwg.mxu0
    %954 = vmatpush.bf16.msra.mxu0 %v733
    %955 = vmatpush.bf16.msra.mxu0 %v731
    %956 = vmatpush.bf16.msra.mxu0 %v729
    %957 = vmatpush.bf16.msra.mxu0 %v727
    %958 = vmatpush.bf16.msra.mxu0 %v725
    %959 = vmatpush.bf16.msra.mxu0 %v723
    %960 = vmatpush.bf16.msra.mxu0 %v721
    %961 = vmatpush.bf16.msra.mxu0 %v719
    %962 = vmatmul.bf16.gmra.mxu0 %v88
    %v963 = vpop.f32.mrf.mxu0
    %v964 = vadd.f32 %v951, %v963
    %v965 = vpop.f32.mrf.mxu0
    %966 = vdwg.mxu0
    %967 = vmatpush.bf16.msra.mxu0 %v622
    %968 = vmatpush.bf16.msra.mxu0 %v620
    %969 = vmatpush.bf16.msra.mxu0 %v618
    %970 = vmatpush.bf16.msra.mxu0 %v616
    %971 = vmatpush.bf16.msra.mxu0 %v614
    %972 = vmatpush.bf16.msra.mxu0 %v612
    %973 = vmatpush.bf16.msra.mxu0 %v610
    %974 = vmatpush.bf16.msra.mxu0 %v608
    %975 = vmatmul.bf16.gmra.mxu0 %v81
    %v976 = vpop.f32.mrf.mxu0
    %v977 = vadd.f32 %v220, %v976
    %v978 = vpop.f32.mrf.mxu0
    %979 = vdwg.mxu0
    %980 = vmatpush.bf16.msra.mxu0 %v638
    %981 = vmatpush.bf16.msra.mxu0 %v636
    %982 = vmatpush.bf16.msra.mxu0 %v634
    %983 = vmatpush.bf16.msra.mxu0 %v632
    %984 = vmatpush.bf16.msra.mxu0 %v630
    %985 = vmatpush.bf16.msra.mxu0 %v628
    %986 = vmatpush.bf16.msra.mxu0 %v626
    %987 = vmatpush.bf16.msra.mxu0 %v624
    %988 = vmatmul.bf16.gmra.mxu0 %v82
    %v989 = vpop.f32.mrf.mxu0
    %v990 = vadd.f32 %v977, %v989
    %v991 = vpop.f32.mrf.mxu0
    %992 = vdwg.mxu0
    %993 = vmatpush.bf16.msra.mxu0 %v654
    %994 = vmatpush.bf16.msra.mxu0 %v652
    %995 = vmatpush.bf16.msra.mxu0 %v650
    %996 = vmatpush.bf16.msra.mxu0 %v648
    %997 = vmatpush.bf16.msra.mxu0 %v646
    %998 = vmatpush.bf16.msra.mxu0 %v644
    %999 = vmatpush.bf16.msra.mxu0 %v642
    %1000 = vmatpush.bf16.msra.mxu0 %v640
    %1001 = vmatmul.bf16.gmra.mxu0 %v83
    %v1002 = vpop.f32.mrf.mxu0
    %v1003 = vadd.f32 %v990, %v1002
    %v1004 = vpop.f32.mrf.mxu0
    %1005 = vdwg.mxu0
    %1006 = vmatpush.bf16.msra.mxu0 %v670
    %1007 = vmatpush.bf16.msra.mxu0 %v668
    %1008 = vmatpush.bf16.msra.mxu0 %v666
    %1009 = vmatpush.bf16.msra.mxu0 %v664
    %1010 = vmatpush.bf16.msra.mxu0 %v662
    %1011 = vmatpush.bf16.msra.mxu0 %v660
    %1012 = vmatpush.bf16.msra.mxu0 %v658
    %1013 = vmatpush.bf16.msra.mxu0 %v656
    %1014 = vmatmul.bf16.gmra.mxu0 %v84
    %v1015 = vpop.f32.mrf.mxu0
    %v1016 = vadd.f32 %v1003, %v1015
    %v1017 = vpop.f32.mrf.mxu0
    %1018 = vdwg.mxu0
    %1019 = vmatpush.bf16.msra.mxu0 %v686
    %1020 = vmatpush.bf16.msra.mxu0 %v684
    %1021 = vmatpush.bf16.msra.mxu0 %v682
    %1022 = vmatpush.bf16.msra.mxu0 %v680
    %1023 = vmatpush.bf16.msra.mxu0 %v678
    %1024 = vmatpush.bf16.msra.mxu0 %v676
    %1025 = vmatpush.bf16.msra.mxu0 %v674
    %1026 = vmatpush.bf16.msra.mxu0 %v672
    %1027 = vmatmul.bf16.gmra.mxu0 %v85
    %v1028 = vpop.f32.mrf.mxu0
    %v1029 = vadd.f32 %v1016, %v1028
    %v1030 = vpop.f32.mrf.mxu0
    %1031 = vdwg.mxu0
    %1032 = vmatpush.bf16.msra.mxu0 %v702
    %1033 = vmatpush.bf16.msra.mxu0 %v700
    %1034 = vmatpush.bf16.msra.mxu0 %v698
    %1035 = vmatpush.bf16.msra.mxu0 %v696
    %1036 = vmatpush.bf16.msra.mxu0 %v694
    %1037 = vmatpush.bf16.msra.mxu0 %v692
    %1038 = vmatpush.bf16.msra.mxu0 %v690
    %1039 = vmatpush.bf16.msra.mxu0 %v688
    %1040 = vmatmul.bf16.gmra.mxu0 %v86
    %v1041 = vpop.f32.mrf.mxu0
    %v1042 = vadd.f32 %v1029, %v1041
    %v1043 = vpop.f32.mrf.mxu0
    %1044 = vdwg.mxu0
    %1045 = vmatpush.bf16.msra.mxu0 %v718
    %1046 = vmatpush.bf16.msra.mxu0 %v716
    %1047 = vmatpush.bf16.msra.mxu0 %v714
    %1048 = vmatpush.bf16.msra.mxu0 %v712
    %1049 = vmatpush.bf16.msra.mxu0 %v710
    %1050 = vmatpush.bf16.msra.mxu0 %v708
    %1051 = vmatpush.bf16.msra.mxu0 %v706
    %1052 = vmatpush.bf16.msra.mxu0 %v704
    %1053 = vmatmul.bf16.gmra.mxu0 %v87
    %v1054 = vpop.f32.mrf.mxu0
    %v1055 = vadd.f32 %v1042, %v1054
    %v1056 = vpop.f32.mrf.mxu0
    %1057 = vdwg.mxu0
    %1058 = vmatpush.bf16.msra.mxu0 %v734
    %1059 = vmatpush.bf16.msra.mxu0 %v732
    %1060 = vmatpush.bf16.msra.mxu0 %v730
    %1061 = vmatpush.bf16.msra.mxu0 %v728
    %1062 = vmatpush.bf16.msra.mxu0 %v726
    %1063 = vmatpush.bf16.msra.mxu0 %v724
    %1064 = vmatpush.bf16.msra.mxu0 %v722
    %1065 = vmatpush.bf16.msra.mxu0 %v720
    %1066 = vmatmul.bf16.gmra.mxu0 %v88
    %v1067 = vpop.f32.mrf.mxu0
    %v1068 = vadd.f32 %v1055, %v1067
    %v1069 = vpop.f32.mrf.mxu0
    %1070 = vdwg.mxu0
    %v1071 = vmax.f32 %v964, 0.0
    %v1072 = vmax.f32 %v1068, 0.0
    %v1073 = vpack.c.bf16 %v1071, %v1071
    %v1074 = vpack.c.bf16 %v1072, %v1072
    %v1075 = vld [vmem:[#allocation4] sm:$0xff]
    %v1076 = vld [vmem:[#allocation4 + $0x8] sm:$0xff]
    %v1077 = vld [vmem:[#allocation4 + $0x10] sm:$0xff]
    %v1078 = vld [vmem:[#allocation4 + $0x18] sm:$0xff]
    %v1079 = vld [vmem:[#allocation4 + $0x20] sm:$0xff]
    %v1080 = vld [vmem:[#allocation4 + $0x28] sm:$0xff]
    %v1081 = vld [vmem:[#allocation4 + $0x30] sm:$0xff]
    %v1082 = vld [vmem:[#allocation4 + $0x38] sm:$0xff]
    %v1083 = vld [vmem:[#allocation4 + $0x40] sm:$0xff]
    %v1084 = vld [vmem:[#allocation4 + $0x48] sm:$0xff]
    %v1085 = vld [vmem:[#allocation4 + $0x50] sm:$0xff]
    %v1086 = vld [vmem:[#allocation4 + $0x58] sm:$0xff]
    %v1087 = vld [vmem:[#allocation4 + $0x60] sm:$0xff]
    %v1088 = vld [vmem:[#allocation4 + $0x68] sm:$0xff]
    %v1089 = vld [vmem:[#allocation4 + $0x70] sm:$0xff]
    %v1090 = vld [vmem:[#allocation4 + $0x78] sm:$0xff]
    %v1091 = vld [vmem:[#allocation4 + $0x80] sm:$0xff]
    %v1092 = vld [vmem:[#allocation4 + $0x88] sm:$0xff]
    %v1093 = vld [vmem:[#allocation4 + $0x90] sm:$0xff]
    %v1094 = vld [vmem:[#allocation4 + $0x98] sm:$0xff]
    %v1095 = vld [vmem:[#allocation4 + $0xa0] sm:$0xff]
    %v1096 = vld [vmem:[#allocation4 + $0xa8] sm:$0xff]
    %v1097 = vld [vmem:[#allocation4 + $0xb0] sm:$0xff]
    %v1098 = vld [vmem:[#allocation4 + $0xb8] sm:$0xff]
    %v1099 = vld [vmem:[#allocation4 + $0xc0] sm:$0xff]
    %v1100 = vld [vmem:[#allocation4 + $0xc8] sm:$0xff]
    %v1101 = vld [vmem:[#allocation4 + $0xd0] sm:$0xff]
    %v1102 = vld [vmem:[#allocation4 + $0xd8] sm:$0xff]
    %v1103 = vld [vmem:[#allocation4 + $0xe0] sm:$0xff]
    %v1104 = vld [vmem:[#allocation4 + $0xe8] sm:$0xff]
    %v1105 = vld [vmem:[#allocation4 + $0xf0] sm:$0xff]
    %v1106 = vld [vmem:[#allocation4 + $0xf8] sm:$0xff]
    %v1107 = vld [vmem:[%s4] sm:$0x3]
    %v1109 = vperm.slane %v1107, 0
    %v1110 = vperm.slane %v1107, 1
    %v1145 = vunpack.c.l.b16 %v1075
    %v1146 = vunpack.c.h.b16 %v1075
    %v1147 = vunpack.c.l.b16 %v1076
    %v1148 = vunpack.c.h.b16 %v1076
    %v1149 = vunpack.c.l.b16 %v1077
    %v1150 = vunpack.c.h.b16 %v1077
    %v1151 = vunpack.c.l.b16 %v1078
    %v1152 = vunpack.c.h.b16 %v1078
    %v1153 = vunpack.c.l.b16 %v1079
    %v1154 = vunpack.c.h.b16 %v1079
    %v1155 = vunpack.c.l.b16 %v1080
    %v1156 = vunpack.c.h.b16 %v1080
    %v1157 = vunpack.c.l.b16 %v1081
    %v1158 = vunpack.c.h.b16 %v1081
    %v1159 = vunpack.c.l.b16 %v1082
    %v1160 = vunpack.c.h.b16 %v1082
    %v1161 = vunpack.c.l.b16 %v1083
    %v1162 = vunpack.c.h.b16 %v1083
    %v1163 = vunpack.c.l.b16 %v1084
    %v1164 = vunpack.c.h.b16 %v1084
    %v1165 = vunpack.c.l.b16 %v1085
    %v1166 = vunpack.c.h.b16 %v1085
    %v1167 = vunpack.c.l.b16 %v1086
    %v1168 = vunpack.c.h.b16 %v1086
    %v1169 = vunpack.c.l.b16 %v1087
    %v1170 = vunpack.c.h.b16 %v1087
    %v1171 = vunpack.c.l.b16 %v1088
    %v1172 = vunpack.c.h.b16 %v1088
    %v1173 = vunpack.c.l.b16 %v1089
    %v1174 = vunpack.c.h.b16 %v1089
    %v1175 = vunpack.c.l.b16 %v1090
    %v1176 = vunpack.c.h.b16 %v1090
    %v1177 = vunpack.c.l.b16 %v1091
    %v1178 = vunpack.c.h.b16 %v1091
    %v1179 = vunpack.c.l.b16 %v1092
    %v1180 = vunpack.c.h.b16 %v1092
    %v1181 = vunpack.c.l.b16 %v1093
    %v1182 = vunpack.c.h.b16 %v1093
    %v1183 = vunpack.c.l.b16 %v1094
    %v1184 = vunpack.c.h.b16 %v1094
    %v1185 = vunpack.c.l.b16 %v1095
    %v1186 = vunpack.c.h.b16 %v1095
    %v1187 = vunpack.c.l.b16 %v1096
    %v1188 = vunpack.c.h.b16 %v1096
    %v1189 = vunpack.c.l.b16 %v1097
    %v1190 = vunpack.c.h.b16 %v1097
    %v1191 = vunpack.c.l.b16 %v1098
    %v1192 = vunpack.c.h.b16 %v1098
    %v1193 = vunpack.c.l.b16 %v1099
    %v1194 = vunpack.c.h.b16 %v1099
    %v1195 = vunpack.c.l.b16 %v1100
    %v1196 = vunpack.c.h.b16 %v1100
    %v1197 = vunpack.c.l.b16 %v1101
    %v1198 = vunpack.c.h.b16 %v1101
    %v1199 = vunpack.c.l.b16 %v1102
    %v1200 = vunpack.c.h.b16 %v1102
    %v1201 = vunpack.c.l.b16 %v1103
    %v1202 = vunpack.c.h.b16 %v1103
    %v1203 = vunpack.c.l.b16 %v1104
    %v1204 = vunpack.c.h.b16 %v1104
    %v1205 = vunpack.c.l.b16 %v1105
    %v1206 = vunpack.c.h.b16 %v1105
    %v1207 = vunpack.c.l.b16 %v1106
    %v1208 = vunpack.c.h.b16 %v1106
    %v1209 = vpack.c.b16 %v1147, %v1145
    %v1210 = vpack.c.b16 %v1148, %v1146
    %v1211 = vpack.c.b16 %v1151, %v1149
    %v1212 = vpack.c.b16 %v1152, %v1150
    %v1213 = vpack.c.b16 %v1155, %v1153
    %v1214 = vpack.c.b16 %v1156, %v1154
    %v1215 = vpack.c.b16 %v1159, %v1157
    %v1216 = vpack.c.b16 %v1160, %v1158
    %v1217 = vpack.c.b16 %v1163, %v1161
    %v1218 = vpack.c.b16 %v1164, %v1162
    %v1219 = vpack.c.b16 %v1167, %v1165
    %v1220 = vpack.c.b16 %v1168, %v1166
    %v1221 = vpack.c.b16 %v1171, %v1169
    %v1222 = vpack.c.b16 %v1172, %v1170
    %v1223 = vpack.c.b16 %v1175, %v1173
    %v1224 = vpack.c.b16 %v1176, %v1174
    %v1225 = vpack.c.b16 %v1179, %v1177
    %v1226 = vpack.c.b16 %v1180, %v1178
    %v1227 = vpack.c.b16 %v1183, %v1181
    %v1228 = vpack.c.b16 %v1184, %v1182
    %v1229 = vpack.c.b16 %v1187, %v1185
    %v1230 = vpack.c.b16 %v1188, %v1186
    %v1231 = vpack.c.b16 %v1191, %v1189
    %v1232 = vpack.c.b16 %v1192, %v1190
    %v1233 = vpack.c.b16 %v1195, %v1193
    %v1234 = vpack.c.b16 %v1196, %v1194
    %v1235 = vpack.c.b16 %v1199, %v1197
    %v1236 = vpack.c.b16 %v1200, %v1198
    %v1237 = vpack.c.b16 %v1203, %v1201
    %v1238 = vpack.c.b16 %v1204, %v1202
    %v1239 = vpack.c.b16 %v1207, %v1205
    %v1240 = vpack.c.b16 %v1208, %v1206
    %1273 = vmatpush.bf16.msra.mxu0 %v1223
    %1274 = vmatpush.bf16.msra.mxu0 %v1221
    %1275 = vmatpush.bf16.msra.mxu0 %v1219
    %1276 = vmatpush.bf16.msra.mxu0 %v1217
    %1277 = vmatpush.bf16.msra.mxu0 %v1215
    %1278 = vmatpush.bf16.msra.mxu0 %v1213
    %1279 = vmatpush.bf16.msra.mxu0 %v1211
    %1280 = vmatpush.bf16.msra.mxu0 %v1209
    %1281 = vmatmul.bf16.gmra.mxu0 %v1073
    %v1282 = vpop.f32.mrf.mxu0
    %v1283 = vadd.f32 %v1109, %v1282
    %v1284 = vpop.f32.mrf.mxu0
    %1285 = vdwg.mxu0
    %1286 = vmatpush.bf16.msra.mxu0 %v1239
    %1287 = vmatpush.bf16.msra.mxu0 %v1237
    %1288 = vmatpush.bf16.msra.mxu0 %v1235
    %1289 = vmatpush.bf16.msra.mxu0 %v1233
    %1290 = vmatpush.bf16.msra.mxu0 %v1231
    %1291 = vmatpush.bf16.msra.mxu0 %v1229
    %1292 = vmatpush.bf16.msra.mxu0 %v1227
    %1293 = vmatpush.bf16.msra.mxu0 %v1225
    %1294 = vmatmul.bf16.gmra.mxu0 %v1074
    %v1295 = vpop.f32.mrf.mxu0
    %v1296 = vadd.f32 %v1283, %v1295
    %v1297 = vpop.f32.mrf.mxu0
    %1298 = vdwg.mxu0
    %1299 = vmatpush.bf16.msra.mxu0 %v1224
    %1300 = vmatpush.bf16.msra.mxu0 %v1222
    %1301 = vmatpush.bf16.msra.mxu0 %v1220
    %1302 = vmatpush.bf16.msra.mxu0 %v1218
    %1303 = vmatpush.bf16.msra.mxu0 %v1216
    %1304 = vmatpush.bf16.msra.mxu0 %v1214
    %1305 = vmatpush.bf16.msra.mxu0 %v1212
    %1306 = vmatpush.bf16.msra.mxu0 %v1210
    %1307 = vmatmul.bf16.gmra.mxu0 %v1073
    %v1308 = vpop.f32.mrf.mxu0
    %v1309 = vadd.f32 %v1110, %v1308
    %v1310 = vpop.f32.mrf.mxu0
    %1311 = vdwg.mxu0
    %1312 = vmatpush.bf16.msra.mxu0 %v1240
    %1313 = vmatpush.bf16.msra.mxu0 %v1238
    %1314 = vmatpush.bf16.msra.mxu0 %v1236
    %1315 = vmatpush.bf16.msra.mxu0 %v1234
    %1316 = vmatpush.bf16.msra.mxu0 %v1232
    %1317 = vmatpush.bf16.msra.mxu0 %v1230
    %1318 = vmatpush.bf16.msra.mxu0 %v1228
    %1319 = vmatpush.bf16.msra.mxu0 %v1226
    %1320 = vmatmul.bf16.gmra.mxu0 %v1074
    %v1321 = vpop.f32.mrf.mxu0
    %v1322 = vadd.f32 %v1309, %v1321
    %v1323 = vpop.f32.mrf.mxu0
    %1324 = vdwg.mxu0
    %v1325 = vmax.f32 %v1296, 0.0
    %v1326 = vmax.f32 %v1322, 0.0
    %v1327 = vpack.c.bf16 %v1325, %v1325
    %v1328 = vpack.c.bf16 %v1326, %v1326
    %v1329 = vld [vmem:[%s5] sm:$0xf]
    %v1330 = vld [vmem:[%s5 + $0x4] sm:$0xf]
    %v1331 = vld [vmem:[%s5 + $0x8] sm:$0xf]
    %v1332 = vld [vmem:[%s5 + $0xc] sm:$0xf]
    %v1333 = vld [vmem:[%s5 + $0x10] sm:$0xf]
    %v1334 = vld [vmem:[%s5 + $0x14] sm:$0xf]
    %v1335 = vld [vmem:[%s5 + $0x18] sm:$0xf]
    %v1336 = vld [vmem:[%s5 + $0x1c] sm:$0xf]
    %v1337 = vld [vmem:[%s5 + $0x20] sm:$0xf]
    %v1338 = vld [vmem:[%s5 + $0x24] sm:$0xf]
    %v1339 = vld [vmem:[%s5 + $0x28] sm:$0xf]
    %v1340 = vld [vmem:[%s5 + $0x2c] sm:$0xf]
    %v1341 = vld [vmem:[%s5 + $0x30] sm:$0xf]
    %v1342 = vld [vmem:[%s5 + $0x34] sm:$0xf]
    %v1343 = vld [vmem:[%s5 + $0x38] sm:$0xf]
    %v1344 = vld [vmem:[%s5 + $0x3c] sm:$0xf]
    %v1345 = vld [vmem:[%s5 + $0x40] sm:$0xf]
    %v1346 = vld [vmem:[%s5 + $0x44] sm:$0xf]
    %v1347 = vld [vmem:[%s5 + $0x48] sm:$0xf]
    %v1348 = vld [vmem:[%s5 + $0x4c] sm:$0xf]
    %v1349 = vld [vmem:[%s5 + $0x50] sm:$0xf]
    %v1350 = vld [vmem:[%s5 + $0x54] sm:$0xf]
    %v1351 = vld [vmem:[%s5 + $0x58] sm:$0xf]
    %v1352 = vld [vmem:[%s5 + $0x5c] sm:$0xf]
    %v1353 = vld [vmem:[%s5 + $0x60] sm:$0xf]
    %v1354 = vld [vmem:[%s5 + $0x64] sm:$0xf]
    %v1355 = vld [vmem:[%s5 + $0x68] sm:$0xf]
    %v1356 = vld [vmem:[%s5 + $0x6c] sm:$0xf]
    %v1357 = vld [vmem:[%s5 + $0x70] sm:$0xf]
    %v1358 = vld [vmem:[%s5 + $0x74] sm:$0xf]
    %v1359 = vld [vmem:[%s5 + $0x78] sm:$0xf]
    %v1360 = vld [vmem:[%s5 + $0x7c] sm:$0xf]
    %v1361 = vld [vmem:[%s6] sm:$0x1]
    %v1363 = vperm.slane %v1361, 0
    %v1397 = vunpack.c.l.b16 %v1329
    %v1398 = vunpack.c.l.b16 %v1330
    %v1399 = vunpack.c.l.b16 %v1331
    %v1400 = vunpack.c.l.b16 %v1332
    %v1401 = vunpack.c.l.b16 %v1333
    %v1402 = vunpack.c.l.b16 %v1334
    %v1403 = vunpack.c.l.b16 %v1335
    %v1404 = vunpack.c.l.b16 %v1336
    %v1405 = vunpack.c.l.b16 %v1337
    %v1406 = vunpack.c.l.b16 %v1338
    %v1407 = vunpack.c.l.b16 %v1339
    %v1408 = vunpack.c.l.b16 %v1340
    %v1409 = vunpack.c.l.b16 %v1341
    %v1410 = vunpack.c.l.b16 %v1342
    %v1411 = vunpack.c.l.b16 %v1343
    %v1412 = vunpack.c.l.b16 %v1344
    %v1413 = vunpack.c.l.b16 %v1345
    %v1414 = vunpack.c.l.b16 %v1346
    %v1415 = vunpack.c.l.b16 %v1347
    %v1416 = vunpack.c.l.b16 %v1348
    %v1417 = vunpack.c.l.b16 %v1349
    %v1418 = vunpack.c.l.b16 %v1350
    %v1419 = vunpack.c.l.b16 %v1351
    %v1420 = vunpack.c.l.b16 %v1352
    %v1421 = vunpack.c.l.b16 %v1353
    %v1422 = vunpack.c.l.b16 %v1354
    %v1423 = vunpack.c.l.b16 %v1355
    %v1424 = vunpack.c.l.b16 %v1356
    %v1425 = vunpack.c.l.b16 %v1357
    %v1426 = vunpack.c.l.b16 %v1358
    %v1427 = vunpack.c.l.b16 %v1359
    %v1428 = vunpack.c.l.b16 %v1360
    %v1429 = vpack.c.b16 %v1398, %v1397
    %v1430 = vpack.c.b16 %v1400, %v1399
    %v1431 = vpack.c.b16 %v1402, %v1401
    %v1432 = vpack.c.b16 %v1404, %v1403
    %v1433 = vpack.c.b16 %v1406, %v1405
    %v1434 = vpack.c.b16 %v1408, %v1407
    %v1435 = vpack.c.b16 %v1410, %v1409
    %v1436 = vpack.c.b16 %v1412, %v1411
    %v1437 = vpack.c.b16 %v1414, %v1413
    %v1438 = vpack.c.b16 %v1416, %v1415
    %v1439 = vpack.c.b16 %v1418, %v1417
    %v1440 = vpack.c.b16 %v1420, %v1419
    %v1441 = vpack.c.b16 %v1422, %v1421
    %v1442 = vpack.c.b16 %v1424, %v1423
    %v1443 = vpack.c.b16 %v1426, %v1425
    %v1444 = vpack.c.b16 %v1428, %v1427
    %1461 = vmatpush.bf16.msra.mxu0 %v1436
    %1462 = vmatpush.bf16.msra.mxu0 %v1435
    %1463 = vmatpush.bf16.msra.mxu0 %v1434
    %1464 = vmatpush.bf16.msra.mxu0 %v1433
    %1465 = vmatpush.bf16.msra.mxu0 %v1432
    %1466 = vmatpush.bf16.msra.mxu0 %v1431
    %1467 = vmatpush.bf16.msra.mxu0 %v1430
    %1468 = vmatpush.bf16.msra.mxu0 %v1429
    %1469 = vmatmul.bf16.gmra.mxu0 %v1327
    %v1470 = vpop.f32.mrf.mxu0
    %v1471 = vadd.f32 %v1363, %v1470
    %v1472 = vpop.f32.mrf.mxu0
    %1473 = vdwg.mxu0
    %1474 = vmatpush.bf16.msra.mxu0 %v1444
    %1475 = vmatpush.bf16.msra.mxu0 %v1443
    %1476 = vmatpush.bf16.msra.mxu0 %v1442
    %1477 = vmatpush.bf16.msra.mxu0 %v1441
    %1478 = vmatpush.bf16.msra.mxu0 %v1440
    %1479 = vmatpush.bf16.msra.mxu0 %v1439
    %1480 = vmatpush.bf16.msra.mxu0 %v1438
    %1481 = vmatpush.bf16.msra.mxu0 %v1437
    %1482 = vmatmul.bf16.gmra.mxu0 %v1328
    %v1483 = vpop.f32.mrf.mxu0
    %v1484 = vadd.f32 %v1471, %v1483
    %v1485 = vpop.f32.mrf.mxu0
    %1486 = vdwg.mxu0
    %v1487 = vpack.c.bf16 %v1484, %v1484
    %1488 = vst [vmem:[%s7] sm:$0x1] %v1487
    // Predicated region
    $region38: #{_lambda_.1} parent=1 // pred_check
      _
    $region39: #{_lambda_.1} parent=1 // pred_check_branch
      %1490 = sbr.rel (0) target = $region41
    $region40: #{_lambda_.1} parent=1 // pred_region
      _
    $region41: #{_lambda_.1} parent=1 // pred_fallthru
      _
    // Predicated region
    $region42: #{_lambda_.1} parent=1 // pred_check
      _
    $region43: #{_lambda_.1} parent=1 // pred_check_branch
      %1492 = sbr.rel (0) target = $region45
    $region44: #{_lambda_.1} parent=1 // pred_region
      _
    $region45: #{_lambda_.1} parent=1 // pred_fallthru
      _
    %1493 = vsyncpa [#allocation3], 1
    %1494 = vsyncpa [#allocation5], 1

</llo_original>
